<compile_context>
chip_gen: v7x
topology: tpu7x:2x2x1
jax: 0.10.0
libtpu: 0.0.40
codegen_flags: <defaults>
</compile_context>

<pallas_src>
import math

import jax
import jax.numpy as jnp
from jax.experimental import pallas as pl
from jax.experimental.pallas import tpu as pltpu


def _round_up(x, m):
    return (x + m - 1) // m * m


# ---------------------------------------------------------------------------
# Kernel
# ---------------------------------------------------------------------------
def critic_kernel(state_ref, action_ref, w1s_ref, w1a_ref, slab_ref, out_ref):
    """Fused twin-head MLP for one batch tile.

    slab layout (rows):  [0:H2)        -> W2  (block-diagonal, [H2, H2])
                         [H2:2*H2)     -> W3  ([H2, H2], cols 0/1 are q1/q2 heads)
                         [2*H2:2*H2+8) -> biases (row 0=b1, 1=b2, 2=b3, rest zero)
    """
    h2 = out_ref.shape[-1]
    w2 = slab_ref[0:h2, :]
    w3 = slab_ref[h2:2 * h2, :]
    biases = slab_ref[2 * h2:2 * h2 + 8, :]
    b1 = biases[0:1, :]
    b2 = biases[1:2, :]
    b3 = biases[2:3, :]

    # Layer 1: split contraction over state/action (no concat needed anywhere).
    h = jnp.dot(state_ref[...], w1s_ref[...], preferred_element_type=jnp.float32)
    h = h + jnp.dot(action_ref[...], w1a_ref[...], preferred_element_type=jnp.float32)
    h = jnp.maximum(h + b1, 0.0)

    # Layer 2: block-diagonal fused weight (q1 block | q2 block), exactly H2 x H2.
    h = jnp.maximum(jnp.dot(h, w2, preferred_element_type=jnp.float32) + b2, 0.0)

    # Layer 3: lane-dense output slab; q1 lives in column 0, q2 in column 1.
    out_ref[...] = jnp.dot(h, w3, preferred_element_type=jnp.float32) + b3


# ---------------------------------------------------------------------------
# Wrapper
# ---------------------------------------------------------------------------
def critic_forward(state, action, fused):
    """Runs the fused twin-Q kernel. Returns (q1, q2), each [B, 1] f32."""
    state = state.astype(jnp.float32)
    action = action.astype(jnp.float32)
    B, S = state.shape
    A = action.shape[1]
    H2 = fused["slab"].shape[1]

    # Batch tiling: big tiles for training-size batches, whole batch for tiny ones.
    tile_b = 512 if B >= 512 else _round_up(max(B, 1), 8)
    b_pad = _round_up(B, tile_b)
    if b_pad != B:
        state = jnp.pad(state, ((0, b_pad - B), (0, 0)))
        action = jnp.pad(action, ((0, b_pad - B), (0, 0)))

    grid = (b_pad // tile_b,)

    out = pl.pallas_call(
        critic_kernel,
        out_shape=jax.ShapeDtypeStruct((b_pad, H2), jnp.float32),
        grid=grid,
        in_specs=[
            pl.BlockSpec((tile_b, S), lambda i: (i, 0)),        # state tile
            pl.BlockSpec((tile_b, A), lambda i: (i, 0)),        # action tile
            pl.BlockSpec((S, H2), lambda i: (0, 0)),            # W1[:S]  (resident)
            pl.BlockSpec((A, H2), lambda i: (0, 0)),            # W1[S:]  (resident)
            pl.BlockSpec((2 * H2 + 8, H2), lambda i: (0, 0)),   # W2|W3|bias slab
        ],
        out_specs=pl.BlockSpec((tile_b, H2), lambda i: (i, 0)),
        compiler_params=pltpu.CompilerParams(
            dimension_semantics=("parallel",)),
    )(state, action, fused["w1s"], fused["w1a"], fused["slab"])

    return out[:B, 0:1], out[:B, 1:2]


# ---------------------------------------------------------------------------
# Parameter construction (mirrors the PyTorch module) + head fusion
# ---------------------------------------------------------------------------
def _orthogonal(key, out_dim, in_dim, gain):
    """Orthogonal init matching torch.nn.init.orthogonal_ semantics."""
    init = jax.nn.initializers.orthogonal(scale=gain)
    w = init(key, (out_dim, in_dim), jnp.float32)   # PyTorch [out, in]
    return jnp.transpose(w)                          # stored as [in, out]


def make_critic_params(key, state_dim, action_dim, hidden_dim=64):
    in_dim = state_dim + action_dim
    gain = math.sqrt(2.0)
    keys = jax.random.split(key, 6)

    def head(k1, k2, k3):
        return {
            "w1": _orthogonal(k1, hidden_dim, in_dim, gain),
            "b1": jnp.zeros((1, hidden_dim), jnp.float32),
            "w2": _orthogonal(k2, hidden_dim, hidden_dim, gain),
            "b2": jnp.zeros((1, hidden_dim), jnp.float32),
            "w3": _orthogonal(k3, 1, hidden_dim, gain),
            "b3": jnp.zeros((1, 1), jnp.float32),
        }

    return {
        "q1": head(keys[0], keys[1], keys[2]),
        "q2": head(keys[3], keys[4], keys[5]),
    }


def fuse_critic_params(params, state_dim, action_dim):
    """Pack the twin heads into the fused/padded layout the kernel expects.

    Done once outside the hot path; all padding columns/rows are zero so the
    fused computation is numerically identical to running the two heads.
    """
    q1, q2 = params["q1"], params["q2"]
    H = q1["w1"].shape[1]
    H2 = max(128, _round_up(2 * H, 128))   # fused, lane-padded hidden width
    S, A = state_dim, action_dim
    pad = H2 - 2 * H

    # Layer 1: concat heads column-wise, pad to H2, split into state/action parts.
    w1 = jnp.concatenate([q1["w1"], q2["w1"]], axis=1)            # [S+A, 2H]
    w1 = jnp.pad(w1, ((0, 0), (0, pad)))                          # [S+A, H2]
    b1 = jnp.pad(jnp.concatenate([q1["b1"], q2["b1"]], axis=1),
                 ((0, 0), (0, pad)))                              # [1, H2]

    # Layer 2: block-diagonal fused weight.
    w2 = jnp.zeros((H2, H2), jnp.float32)
    w2 = w2.at[:H, :H].set(q1["w2"]).at[H:2 * H, H:2 * H].set(q2["w2"])
    b2 = jnp.pad(jnp.concatenate([q1["b2"], q2["b2"]], axis=1),
                 ((0, 0), (0, pad)))

    # Layer 3: lane-dense output head (col 0 = q1, col 1 = q2).
    w3 = jnp.zeros((H2, H2), jnp.float32)
    w3 = w3.at[:H, 0:1].set(q1["w3"]).at[H:2 * H, 1:2].set(q2["w3"])
    b3 = jnp.zeros((1, H2), jnp.float32)
    b3 = b3.at[0, 0].set(q1["b3"][0, 0]).at[0, 1].set(q2["b3"][0, 0])

    biases = jnp.concatenate([b1, b2, b3, jnp.zeros((5, H2), jnp.float32)],
                             axis=0)                              # [8, H2]
    slab = jnp.concatenate([w2, w3, biases], axis=0)              # [2*H2+8, H2]

    return {"w1s": w1[:S], "w1a": w1[S:S + A], "slab": slab}


# ---------------------------------------------------------------------------
# Pure-JAX reference (unfused, per-head) for correctness checking
# ---------------------------------------------------------------------------
def _reference_forward(state, action, params):
    sa = jnp.concatenate([state, action], axis=1).astype(jnp.float32)

    def head(p):
        h = jnp.maximum(sa @ p["w1"] + p["b1"], 0.0)
        h = jnp.maximum(h @ p["w2"] + p["b2"], 0.0)
        return h @ p["w3"] + p["b3"]

    return head(params["q1"]), head(params["q2"])


if __name__ == "__main__":
    # Small shapes consistent with the module: batch=8, state_dim=12,
    # action_dim=4, hidden_dim=32.
    batch, state_dim, action_dim, hidden_dim = 8, 12, 4, 32

    key = jax.random.PRNGKey(0)
    k_state, k_action, k_params = jax.random.split(key, 3)

    state = jax.random.normal(k_state, (batch, state_dim), jnp.float32)
    action = jax.random.normal(k_action, (batch, action_dim), jnp.float32)
    params = make_critic_params(k_params, state_dim, action_dim, hidden_dim)
    fused = fuse_critic_params(params, state_dim, action_dim)

    q1, q2 = critic_forward(state, action, fused)
    jax.block_until_ready((q1, q2))

    r1, r2 = _reference_forward(state, action, params)
    assert q1.shape == (batch, 1) and q2.shape == (batch, 1)
    assert jnp.allclose(q1, r1, atol=1e-4, rtol=1e-4), "q1 mismatch vs reference"
    assert jnp.allclose(q2, r2, atol=1e-4, rtol=1e-4), "q2 mismatch vs reference"

    print("KERNEL_OK")
</pallas_src>

<mosaic_0001>
module attributes {stable_mosaic.version = 11 : i64} {
  func.func @critic_kernel(%arg0: i32, %arg1: memref<8x12xf32, #tpu.memory_space<vmem>>, %arg2: memref<8x4xf32, #tpu.memory_space<vmem>>, %arg3: memref<12x128xf32, #tpu.memory_space<vmem>>, %arg4: memref<4x128xf32, #tpu.memory_space<vmem>>, %arg5: memref<264x128xf32, #tpu.memory_space<vmem>>, %arg6: memref<8x128xf32, #tpu.memory_space<vmem>>) attributes {dimension_semantics = [#tpu.dimension_semantics<parallel>], iteration_bounds = array<i64: 1>, scalar_prefetch = 0 : i64, scratch_operands = 0 : i64, tpu.core_type = #tpu.core_type<tc>, window_params = [{transform_indices = @transform_0, window_bounds = array<i64: 8, 12>}, {transform_indices = @transform_1, window_bounds = array<i64: 8, 4>}, {pipeline_mode = #tpu.pipeline_mode<synchronous>, transform_indices = @transform_2, window_bounds = array<i64: 12, 128>}, {pipeline_mode = #tpu.pipeline_mode<synchronous>, transform_indices = @transform_3, window_bounds = array<i64: 4, 128>}, {pipeline_mode = #tpu.pipeline_mode<synchronous>, transform_indices = @transform_4, window_bounds = array<i64: 264, 128>}, {transform_indices = @transform_5, window_bounds = array<i64: 8, 128>}]} {
    %c0 = arith.constant 0 : index
    %c0_0 = arith.constant 0 : index
    %0 = vector.load %arg5[%c0, %c0_0] : memref<264x128xf32, #tpu.memory_space<vmem>>, vector<128x128xf32>
    %c128 = arith.constant 128 : index
    %c0_1 = arith.constant 0 : index
    %1 = vector.load %arg5[%c128, %c0_1] : memref<264x128xf32, #tpu.memory_space<vmem>>, vector<128x128xf32>
    %c256 = arith.constant 256 : index
    %c0_2 = arith.constant 0 : index
    %2 = vector.load %arg5[%c256, %c0_2] : memref<264x128xf32, #tpu.memory_space<vmem>>, vector<8x128xf32>
    %3 = vector.extract_strided_slice %2 {offsets = [0, 0], sizes = [1, 128], strides = [1, 1]} : vector<8x128xf32> to vector<1x128xf32>
    %4 = vector.extract_strided_slice %2 {offsets = [1, 0], sizes = [1, 128], strides = [1, 1]} : vector<8x128xf32> to vector<1x128xf32>
    %5 = vector.extract_strided_slice %2 {offsets = [2, 0], sizes = [1, 128], strides = [1, 1]} : vector<8x128xf32> to vector<1x128xf32>
    %c0_3 = arith.constant 0 : index
    %c0_4 = arith.constant 0 : index
    %6 = vector.load %arg1[%c0_3, %c0_4] : memref<8x12xf32, #tpu.memory_space<vmem>>, vector<8x12xf32>
    %c0_5 = arith.constant 0 : index
    %c0_6 = arith.constant 0 : index
    %7 = vector.load %arg3[%c0_5, %c0_6] : memref<12x128xf32, #tpu.memory_space<vmem>>, vector<12x128xf32>
    %cst = arith.constant dense<0.000000e+00> : vector<8x128xf32>
    %8 = tpu.matmul %6, %7, %cst {dimension_numbers = #tpu.dot_dimension_numbers<[1], [0], [0], [1], [0, 0, 1, 1], [], []>} : vector<8x12xf32>, vector<12x128xf32>, vector<8x128xf32> -> vector<8x128xf32>
    %c0_7 = arith.constant 0 : index
    %c0_8 = arith.constant 0 : index
    %9 = vector.load %arg2[%c0_7, %c0_8] : memref<8x4xf32, #tpu.memory_space<vmem>>, vector<8x4xf32>
    %c0_9 = arith.constant 0 : index
    %c0_10 = arith.constant 0 : index
    %10 = vector.load %arg4[%c0_9, %c0_10] : memref<4x128xf32, #tpu.memory_space<vmem>>, vector<4x128xf32>
    %cst_11 = arith.constant dense<0.000000e+00> : vector<8x128xf32>
    %11 = tpu.matmul %9, %10, %cst_11 {dimension_numbers = #tpu.dot_dimension_numbers<[1], [0], [0], [1], [0, 0, 1, 1], [], []>} : vector<8x4xf32>, vector<4x128xf32>, vector<8x128xf32> -> vector<8x128xf32>
    %12 = arith.addf %8, %11 : vector<8x128xf32>
    %13 = vector.broadcast %3 : vector<1x128xf32> to vector<8x128xf32>
    %14 = arith.addf %12, %13 : vector<8x128xf32>
    %cst_12 = arith.constant 0.000000e+00 : f32
    %15 = vector.broadcast %cst_12 : f32 to vector<8x128xf32>
    %16 = arith.maximumf %14, %15 : vector<8x128xf32>
    %cst_13 = arith.constant dense<0.000000e+00> : vector<8x128xf32>
    %17 = tpu.matmul %16, %0, %cst_13 {dimension_numbers = #tpu.dot_dimension_numbers<[1], [0], [0], [1], [0, 0, 1, 1], [], []>} : vector<8x128xf32>, vector<128x128xf32>, vector<8x128xf32> -> vector<8x128xf32>
    %18 = vector.broadcast %4 : vector<1x128xf32> to vector<8x128xf32>
    %19 = arith.addf %17, %18 : vector<8x128xf32>
    %cst_14 = arith.constant 0.000000e+00 : f32
    %20 = vector.broadcast %cst_14 : f32 to vector<8x128xf32>
    %21 = arith.maximumf %19, %20 : vector<8x128xf32>
    %cst_15 = arith.constant dense<0.000000e+00> : vector<8x128xf32>
    %22 = tpu.matmul %21, %1, %cst_15 {dimension_numbers = #tpu.dot_dimension_numbers<[1], [0], [0], [1], [0, 0, 1, 1], [], []>} : vector<8x128xf32>, vector<128x128xf32>, vector<8x128xf32> -> vector<8x128xf32>
    %23 = vector.broadcast %5 : vector<1x128xf32> to vector<8x128xf32>
    %24 = arith.addf %22, %23 : vector<8x128xf32>
    %c0_16 = arith.constant 0 : index
    %c0_17 = arith.constant 0 : index
    %25 = vector.load %arg6[%c0_16, %c0_17] : memref<8x128xf32, #tpu.memory_space<vmem>>, vector<8x128xf32>
    tpu.vector_store %arg6[%c0_16, %c0_17], %24 {strides = array<i32>} : memref<8x128xf32, #tpu.memory_space<vmem>>, vector<8x128xf32>,
    return
  }
  func.func @transform_0(%arg0: i32) -> (i32, i32) {
    %c0_i32 = arith.constant 0 : i32
    %c0_i32_0 = arith.constant 0 : i32
    return %arg0, %c0_i32 : i32, i32
  }
  func.func @transform_1(%arg0: i32) -> (i32, i32) {
    %c0_i32 = arith.constant 0 : i32
    %c0_i32_0 = arith.constant 0 : i32
    return %arg0, %c0_i32 : i32, i32
  }
  func.func @transform_2(%arg0: i32) -> (i32, i32) {
    %c0_i32 = arith.constant 0 : i32
    %c0_i32_0 = arith.constant 0 : i32
    %c0_i32_1 = arith.constant 0 : i32
    return %c0_i32, %c0_i32_0 : i32, i32
  }
  func.func @transform_3(%arg0: i32) -> (i32, i32) {
    %c0_i32 = arith.constant 0 : i32
    %c0_i32_0 = arith.constant 0 : i32
    %c0_i32_1 = arith.constant 0 : i32
    return %c0_i32, %c0_i32_0 : i32, i32
  }
  func.func @transform_4(%arg0: i32) -> (i32, i32) {
    %c0_i32 = arith.constant 0 : i32
    %c0_i32_0 = arith.constant 0 : i32
    %c0_i32_1 = arith.constant 0 : i32
    return %c0_i32, %c0_i32_0 : i32, i32
  }
  func.func @transform_5(%arg0: i32) -> (i32, i32) {
    %c0_i32 = arith.constant 0 : i32
    %c0_i32_0 = arith.constant 0 : i32
    return %arg0, %c0_i32 : i32, i32
  }
}

</mosaic_0001>

<llo_original>
// kernel: tpu_custom_call.1
$region0: #{tpu_custom_call.1}
  #allocation0 [shape = 'u32[]', space=smem, size = 0x4, offset = 0x4, fixed_abs, tag = 'smem constant byte address 0x4 - core index']
  #allocation1 [shape = 'u32[144,128]{1,0:T(1,128)}', space=vmem, size = 0x12000, scoped, tag = 'internal scratch']
  %s0 = inlined_call_operand.hbm [shape: f32[8,12], index: 0, kind: input, shape index: {}]
  %s1 = inlined_call_operand.vmem [shape: f32[8,4], index: 1, kind: input, shape index: {}]
  %s2 = inlined_call_operand.vmem [shape: f32[12,128], index: 2, kind: input, shape index: {}]
  %s3 = inlined_call_operand.vmem [shape: f32[4,128], index: 3, kind: input, shape index: {}]
  %s4 = inlined_call_operand.hbm [shape: f32[264,128], index: 4, kind: input, shape index: {}]
  %s5 = inlined_call_operand.hbm [shape: f32[8,128], index: 5, kind: output, shape index: {}]
  %s6 = sld [smem:[#allocation0]]
  $region38: #{tpu_custom_call.1} parent=0
    _
  %s8 = ssub.s32 1, %s6
  %s9 = scalar_select 0, %s8, %s6
  $region1: #{tpu_custom_call.1} parent=0
    #allocation2 [shape = 'u8[4096]{0}', space=vmem, size = 0x1000, scoped, tag = 'input window, operand 0, single buffered']
    #allocation3 [shape = 's32[1]{0}', space=sflag, size = 0x4, scoped, tag = 'scoped memory for tpu_custom_call.1']
    #allocation4 [shape = 's32[1]{0}', space=sflag, size = 0x4, scoped, tag = 'scoped memory for tpu_custom_call.1']
    #allocation5 [shape = 'u8[135168]{0}', space=vmem, size = 0x21000, scoped, tag = 'input window, operand 4, single buffered']
    #allocation6 [shape = 's32[1]{0}', space=sflag, size = 0x4, scoped, tag = 'scoped memory for tpu_custom_call.1']
    #allocation7 [shape = 'u8[4096]{0}', space=vmem, size = 0x1000, scoped, tag = 'output window, operand 0, single buffered']
    %10 = vsyncpa [#allocation3], 0
    %11 = vsyncpa [#allocation6], 0
    %12 = vsyncpa [#allocation4], 0
    // Predicated region
    $region2: #{tpu_custom_call.1} parent=1 // pred_check
      _
    $region3: #{tpu_custom_call.1} parent=1 // pred_check_branch
      %14 = sbr.rel (0) target = $region5
    $region4: #{tpu_custom_call.1} parent=1 // pred_region
      %s16 = ssub.s32 128, 128
      %17 = vsyncadd [#allocation3], %s16
      %s19 = sshll.u32 [#allocation2], 4
      %s20 = int_to_ptr.vmem [resolvable:$true] %s19
      %22 = dma.hbm_to_vmem [thread:$0]  %s0, 128, %s20, [#allocation3]
    $region5: #{tpu_custom_call.1} parent=1 // pred_fallthru
      _
    // Predicated region
    $region6: #{tpu_custom_call.1} parent=1 // pred_check
      _
    $region7: #{tpu_custom_call.1} parent=1 // pred_check_branch
      %24 = sbr.rel (0) target = $region9
    $region8: #{tpu_custom_call.1} parent=1 // pred_region
      _
    $region9: #{tpu_custom_call.1} parent=1 // pred_fallthru
      _
    // Predicated region
    $region10: #{tpu_custom_call.1} parent=1 // pred_check
      _
    $region11: #{tpu_custom_call.1} parent=1 // pred_check_branch
      %26 = sbr.rel (0) target = $region13
    $region12: #{tpu_custom_call.1} parent=1 // pred_region
      _
    $region13: #{tpu_custom_call.1} parent=1 // pred_fallthru
      _
    // Predicated region
    $region14: #{tpu_custom_call.1} parent=1 // pred_check
      _
    $region15: #{tpu_custom_call.1} parent=1 // pred_check_branch
      %28 = sbr.rel (0) target = $region17
    $region16: #{tpu_custom_call.1} parent=1 // pred_region
      _
    $region17: #{tpu_custom_call.1} parent=1 // pred_fallthru
      _
    // Predicated region
    $region18: #{tpu_custom_call.1} parent=1 // pred_check
      _
    $region19: #{tpu_custom_call.1} parent=1 // pred_check_branch
      %30 = sbr.rel (0) target = $region21
    $region20: #{tpu_custom_call.1} parent=1 // pred_region
      %s32 = ssub.s32 4224, 4224
      %33 = vsyncadd [#allocation6], %s32
      %s34 = sshll.u32 [#allocation5], 4
      %s35 = int_to_ptr.vmem [resolvable:$true] %s34
      %40 = dma.hbm_to_vmem [thread:$0]  %s4, 4224, %s35, [#allocation6], 128, 128, 8
    $region21: #{tpu_custom_call.1} parent=1 // pred_fallthru
      _
    // Predicated region
    $region22: #{tpu_custom_call.1} parent=1 // pred_check
      _
    $region23: #{tpu_custom_call.1} parent=1 // pred_check_branch
      %42 = sbr.rel (0) target = $region25
    $region24: #{tpu_custom_call.1} parent=1 // pred_region
      %43 = dma.done [#allocation3], 128
    $region25: #{tpu_custom_call.1} parent=1 // pred_fallthru
      _
    // Predicated region
    $region26: #{tpu_custom_call.1} parent=1 // pred_check
      _
    $region27: #{tpu_custom_call.1} parent=1 // pred_check_branch
      %45 = sbr.rel (0) target = $region29
    $region28: #{tpu_custom_call.1} parent=1 // pred_region
      %46 = dma.done [#allocation6], 4224
    $region29: #{tpu_custom_call.1} parent=1 // pred_fallthru
      _
    %v47 = vld [vmem:[#allocation5] sm:$0xff]
    %v48 = vld [vmem:[#allocation5 + $0x8] sm:$0xff]
    %v49 = vld [vmem:[#allocation5 + $0x10] sm:$0xff]
    %v50 = vld [vmem:[#allocation5 + $0x18] sm:$0xff]
    %v51 = vld [vmem:[#allocation5 + $0x20] sm:$0xff]
    %v52 = vld [vmem:[#allocation5 + $0x28] sm:$0xff]
    %v53 = vld [vmem:[#allocation5 + $0x30] sm:$0xff]
    %v54 = vld [vmem:[#allocation5 + $0x38] sm:$0xff]
    %v55 = vld [vmem:[#allocation5 + $0x40] sm:$0xff]
    %v56 = vld [vmem:[#allocation5 + $0x48] sm:$0xff]
    %v57 = vld [vmem:[#allocation5 + $0x50] sm:$0xff]
    %v58 = vld [vmem:[#allocation5 + $0x58] sm:$0xff]
    %v59 = vld [vmem:[#allocation5 + $0x60] sm:$0xff]
    %v60 = vld [vmem:[#allocation5 + $0x68] sm:$0xff]
    %v61 = vld [vmem:[#allocation5 + $0x70] sm:$0xff]
    %v62 = vld [vmem:[#allocation5 + $0x78] sm:$0xff]
    %v63 = vld [vmem:[#allocation5 + $0x80] sm:$0xff]
    %v64 = vld [vmem:[#allocation5 + $0x88] sm:$0xff]
    %v65 = vld [vmem:[#allocation5 + $0x90] sm:$0xff]
    %v66 = vld [vmem:[#allocation5 + $0x98] sm:$0xff]
    %v67 = vld [vmem:[#allocation5 + $0xa0] sm:$0xff]
    %v68 = vld [vmem:[#allocation5 + $0xa8] sm:$0xff]
    %v69 = vld [vmem:[#allocation5 + $0xb0] sm:$0xff]
    %v70 = vld [vmem:[#allocation5 + $0xb8] sm:$0xff]
    %v71 = vld [vmem:[#allocation5 + $0xc0] sm:$0xff]
    %v72 = vld [vmem:[#allocation5 + $0xc8] sm:$0xff]
    %v73 = vld [vmem:[#allocation5 + $0xd0] sm:$0xff]
    %v74 = vld [vmem:[#allocation5 + $0xd8] sm:$0xff]
    %v75 = vld [vmem:[#allocation5 + $0xe0] sm:$0xff]
    %v76 = vld [vmem:[#allocation5 + $0xe8] sm:$0xff]
    %v77 = vld [vmem:[#allocation5 + $0xf0] sm:$0xff]
    %v78 = vld [vmem:[#allocation5 + $0xf8] sm:$0xff]
    %v79 = vld [vmem:[#allocation5 + $0x100] sm:$0xff]
    %v80 = vld [vmem:[#allocation2] sm:$0xff]
    %v81 = vld [vmem:[%s2] sm:$0xff]
    %v82 = vld [vmem:[%s2 + $0x8] sm:$0xf]
    %v83 = vld [vmem:[%s1] sm:$0xff]
    %v84 = vld [vmem:[%s3] sm:$0xf]
    %vm85 = vcmask 31744
    %v87 = vsel %vm85, %v83, 0
    %vm89 = vcmask 1043456
    %v91 = vsel %vm89, %v84, 0
    %93 = vmatprep.subr.mxu0 0.0
    %94 = vmatpush1.msra.mxu0 %v91
    %95 = vmatprep.subr.mxu0 0.0
    %96 = vmatpush1.msra.mxu0 0.0
    %97 = vmatprep.subr.mxu0 0.0
    %98 = vmatpush1.msra.mxu0 0.0
    %99 = vmatprep.subr.mxu0 0.0
    %100 = vmatpush1.msra.mxu0 0.0
    %101 = vmatprep.subr.mxu0 0.0
    %102 = vmatpush1.msra.mxu0 0.0
    %103 = vmatprep.subr.mxu0 0.0
    %104 = vmatpush1.msra.mxu0 0.0
    %105 = vmatprep.subr.mxu0 0.0
    %106 = vmatpush1.msra.mxu0 0.0
    %107 = vmatprep.subr.mxu0 0.0
    %108 = vmatpush1.msra.mxu0 0.0
    %109 = vmatprep.subr.mxu0 0.0
    %110 = vmatpush1.msra.mxu0 0.0
    %111 = vmatprep.subr.mxu0 0.0
    %112 = vmatpush1.msra.mxu0 0.0
    %113 = vmatprep.subr.mxu0 0.0
    %114 = vmatpush1.msra.mxu0 0.0
    %115 = vmatprep.subr.mxu0 0.0
    %116 = vmatpush1.msra.mxu0 0.0
    %117 = vmatprep.subr.mxu0 0.0
    %118 = vmatpush1.msra.mxu0 0.0
    %119 = vmatprep.subr.mxu0 0.0
    %120 = vmatpush1.msra.mxu0 0.0
    %121 = vmatprep.subr.mxu0 0.0
    %122 = vmatpush1.msra.mxu0 0.0
    %123 = vmatprep.subr.mxu0 0.0
    %124 = vmatpush1.msra.mxu0 0.0
    %125 = vmatprep.subr.mxu0 0.0
    %126 = vmatpush1.msra.mxu0 0.0
    %127 = vmatprep.subr.mxu0 0.0
    %128 = vmatpush1.msra.mxu0 0.0
    %129 = vmatprep.subr.mxu0 0.0
    %130 = vmatpush1.msra.mxu0 0.0
    %131 = vmatprep.subr.mxu0 0.0
    %132 = vmatpush1.msra.mxu0 0.0
    %133 = vmatprep.subr.mxu0 0.0
    %134 = vmatpush1.msra.mxu0 0.0
    %135 = vmatprep.subr.mxu0 0.0
    %136 = vmatpush1.msra.mxu0 0.0
    %137 = vmatprep.subr.mxu0 0.0
    %138 = vmatpush1.msra.mxu0 0.0
    %139 = vmatprep.subr.mxu0 0.0
    %140 = vmatpush1.msra.mxu0 0.0
    %141 = vmatprep.subr.mxu0 0.0
    %142 = vmatpush1.msra.mxu0 0.0
    %143 = vmatprep.subr.mxu0 0.0
    %144 = vmatpush1.msra.mxu0 0.0
    %145 = vmatprep.subr.mxu0 0.0
    %146 = vmatpush1.msra.mxu0 0.0
    %147 = vmatprep.subr.mxu0 0.0
    %148 = vmatpush1.msra.mxu0 0.0
    %149 = vmatprep.subr.mxu0 0.0
    %150 = vmatpush1.msra.mxu0 0.0
    %151 = vmatprep.subr.mxu0 0.0
    %152 = vmatpush1.msra.mxu0 0.0
    %153 = vmatprep.subr.mxu0 0.0
    %154 = vmatpush1.msra.mxu0 0.0
    %155 = vmatprep.subr.mxu0 0.0
    %156 = vmatpush1.msra.mxu0 0.0
    %157 = vmatprep.mubr.f32.mxu0 0.0
    %158 = vmatmul.mubr.f32.gmra.mrb[0].mxu0 %v87
    %v159 = vpop.f32.mrb[0].mxu0
    %v160 = vadd.f32 0.0, %v159
    %v161 = vpop.f32.mrb[0].mxu0
    %162 = vdwg.mxu0
    %vm163 = vcmask 97280
    %v165 = vsel %vm163, %v80, 0
    %v168 = vsel %vm89, %v82, 0
    %170 = vmatprep.subr.mxu0 0.0
    %171 = vmatpush1.msra.mxu0 %v81
    %172 = vmatprep.subr.mxu0 0.0
    %173 = vmatpush1.msra.mxu0 %v168
    %174 = vmatprep.subr.mxu0 0.0
    %175 = vmatpush1.msra.mxu0 0.0
    %176 = vmatprep.subr.mxu0 0.0
    %177 = vmatpush1.msra.mxu0 0.0
    %178 = vmatprep.subr.mxu0 0.0
    %179 = vmatpush1.msra.mxu0 0.0
    %180 = vmatprep.subr.mxu0 0.0
    %181 = vmatpush1.msra.mxu0 0.0
    %182 = vmatprep.subr.mxu0 0.0
    %183 = vmatpush1.msra.mxu0 0.0
    %184 = vmatprep.subr.mxu0 0.0
    %185 = vmatpush1.msra.mxu0 0.0
    %186 = vmatprep.subr.mxu0 0.0
    %187 = vmatpush1.msra.mxu0 0.0
    %188 = vmatprep.subr.mxu0 0.0
    %189 = vmatpush1.msra.mxu0 0.0
    %190 = vmatprep.subr.mxu0 0.0
    %191 = vmatpush1.msra.mxu0 0.0
    %192 = vmatprep.subr.mxu0 0.0
    %193 = vmatpush1.msra.mxu0 0.0
    %194 = vmatprep.subr.mxu0 0.0
    %195 = vmatpush1.msra.mxu0 0.0
    %196 = vmatprep.subr.mxu0 0.0
    %197 = vmatpush1.msra.mxu0 0.0
    %198 = vmatprep.subr.mxu0 0.0
    %199 = vmatpush1.msra.mxu0 0.0
    %200 = vmatprep.subr.mxu0 0.0
    %201 = vmatpush1.msra.mxu0 0.0
    %202 = vmatprep.subr.mxu0 0.0
    %203 = vmatpush1.msra.mxu0 0.0
    %204 = vmatprep.subr.mxu0 0.0
    %205 = vmatpush1.msra.mxu0 0.0
    %206 = vmatprep.subr.mxu0 0.0
    %207 = vmatpush1.msra.mxu0 0.0
    %208 = vmatprep.subr.mxu0 0.0
    %209 = vmatpush1.msra.mxu0 0.0
    %210 = vmatprep.subr.mxu0 0.0
    %211 = vmatpush1.msra.mxu0 0.0
    %212 = vmatprep.subr.mxu0 0.0
    %213 = vmatpush1.msra.mxu0 0.0
    %214 = vmatprep.subr.mxu0 0.0
    %215 = vmatpush1.msra.mxu0 0.0
    %216 = vmatprep.subr.mxu0 0.0
    %217 = vmatpush1.msra.mxu0 0.0
    %218 = vmatprep.subr.mxu0 0.0
    %219 = vmatpush1.msra.mxu0 0.0
    %220 = vmatprep.subr.mxu0 0.0
    %221 = vmatpush1.msra.mxu0 0.0
    %222 = vmatprep.subr.mxu0 0.0
    %223 = vmatpush1.msra.mxu0 0.0
    %224 = vmatprep.subr.mxu0 0.0
    %225 = vmatpush1.msra.mxu0 0.0
    %226 = vmatprep.subr.mxu0 0.0
    %227 = vmatpush1.msra.mxu0 0.0
    %228 = vmatprep.subr.mxu0 0.0
    %229 = vmatpush1.msra.mxu0 0.0
    %230 = vmatprep.subr.mxu0 0.0
    %231 = vmatpush1.msra.mxu0 0.0
    %232 = vmatprep.subr.mxu0 0.0
    %233 = vmatpush1.msra.mxu0 0.0
    %234 = vmatprep.mubr.f32.mxu0 0.0
    %235 = vmatmul.mubr.f32.gmra.mrb[0].mxu0 %v165
    %v236 = vpop.f32.mrb[0].mxu0
    %v237 = vadd.f32 %v160, %v236
    %v238 = vpop.f32.mrb[0].mxu0
    %239 = vdwg.mxu0
    %v240 = vlaneseq
    %v241 = vshrl.u32 %v240, 7
    %v242 = vsub.s32 0, %v241
    %v243 = vrot.slane %v79, %v242
    %v244 = vadd.f32 %v237, %v243
    %v245 = vmax.f32 %v244, 0.0
    %v246 = vlaneseq
    %v247 = vshrl.u32 %v246, 7
    %v248 = vsub.s32 1, %v247
    %v249 = vrot.slane %v79, %v248
    %250 = vmatprep.subr.mxu0 0.0
    %251 = vmatpush1.msra.mxu0 %v47
    %252 = vmatprep.subr.mxu0 0.0
    %253 = vmatpush1.msra.mxu0 %v48
    %254 = vmatprep.subr.mxu0 0.0
    %255 = vmatpush1.msra.mxu0 %v49
    %256 = vmatprep.subr.mxu0 0.0
    %257 = vmatpush1.msra.mxu0 %v50
    %258 = vmatprep.subr.mxu0 0.0
    %259 = vmatpush1.msra.mxu0 %v51
    %260 = vmatprep.subr.mxu0 0.0
    %261 = vmatpush1.msra.mxu0 %v52
    %262 = vmatprep.subr.mxu0 0.0
    %263 = vmatpush1.msra.mxu0 %v53
    %264 = vmatprep.subr.mxu0 0.0
    %265 = vmatpush1.msra.mxu0 %v54
    %266 = vmatprep.subr.mxu0 0.0
    %267 = vmatpush1.msra.mxu0 %v55
    %268 = vmatprep.subr.mxu0 0.0
    %269 = vmatpush1.msra.mxu0 %v56
    %270 = vmatprep.subr.mxu0 0.0
    %271 = vmatpush1.msra.mxu0 %v57
    %272 = vmatprep.subr.mxu0 0.0
    %273 = vmatpush1.msra.mxu0 %v58
    %274 = vmatprep.subr.mxu0 0.0
    %275 = vmatpush1.msra.mxu0 %v59
    %276 = vmatprep.subr.mxu0 0.0
    %277 = vmatpush1.msra.mxu0 %v60
    %278 = vmatprep.subr.mxu0 0.0
    %279 = vmatpush1.msra.mxu0 %v61
    %280 = vmatprep.subr.mxu0 0.0
    %281 = vmatpush1.msra.mxu0 %v62
    %282 = vmatprep.subr.mxu0 0.0
    %283 = vmatpush1.msra.mxu0 0.0
    %284 = vmatprep.subr.mxu0 0.0
    %285 = vmatpush1.msra.mxu0 0.0
    %286 = vmatprep.subr.mxu0 0.0
    %287 = vmatpush1.msra.mxu0 0.0
    %288 = vmatprep.subr.mxu0 0.0
    %289 = vmatpush1.msra.mxu0 0.0
    %290 = vmatprep.subr.mxu0 0.0
    %291 = vmatpush1.msra.mxu0 0.0
    %292 = vmatprep.subr.mxu0 0.0
    %293 = vmatpush1.msra.mxu0 0.0
    %294 = vmatprep.subr.mxu0 0.0
    %295 = vmatpush1.msra.mxu0 0.0
    %296 = vmatprep.subr.mxu0 0.0
    %297 = vmatpush1.msra.mxu0 0.0
    %298 = vmatprep.subr.mxu0 0.0
    %299 = vmatpush1.msra.mxu0 0.0
    %300 = vmatprep.subr.mxu0 0.0
    %301 = vmatpush1.msra.mxu0 0.0
    %302 = vmatprep.subr.mxu0 0.0
    %303 = vmatpush1.msra.mxu0 0.0
    %304 = vmatprep.subr.mxu0 0.0
    %305 = vmatpush1.msra.mxu0 0.0
    %306 = vmatprep.subr.mxu0 0.0
    %307 = vmatpush1.msra.mxu0 0.0
    %308 = vmatprep.subr.mxu0 0.0
    %309 = vmatpush1.msra.mxu0 0.0
    %310 = vmatprep.subr.mxu0 0.0
    %311 = vmatpush1.msra.mxu0 0.0
    %312 = vmatprep.subr.mxu0 0.0
    %313 = vmatpush1.msra.mxu0 0.0
    %314 = vmatprep.mubr.f32.mxu0 0.0
    %315 = vmatmul.mubr.f32.gmra.mrb[0].mxu0 %v245
    %v316 = vpop.f32.mrb[0].mxu0
    %v317 = vadd.f32 %v249, %v316
    %v318 = vpop.f32.mrb[0].mxu0
    %319 = vdwg.mxu0
    %v320 = vmax.f32 %v317, 0.0
    %v321 = vlaneseq
    %v322 = vshrl.u32 %v321, 7
    %v323 = vsub.s32 2, %v322
    %v324 = vrot.slane %v79, %v323
    %325 = vmatprep.subr.mxu0 0.0
    %326 = vmatpush1.msra.mxu0 %v63
    %327 = vmatprep.subr.mxu0 0.0
    %328 = vmatpush1.msra.mxu0 %v64
    %329 = vmatprep.subr.mxu0 0.0
    %330 = vmatpush1.msra.mxu0 %v65
    %331 = vmatprep.subr.mxu0 0.0
    %332 = vmatpush1.msra.mxu0 %v66
    %333 = vmatprep.subr.mxu0 0.0
    %334 = vmatpush1.msra.mxu0 %v67
    %335 = vmatprep.subr.mxu0 0.0
    %336 = vmatpush1.msra.mxu0 %v68
    %337 = vmatprep.subr.mxu0 0.0
    %338 = vmatpush1.msra.mxu0 %v69
    %339 = vmatprep.subr.mxu0 0.0
    %340 = vmatpush1.msra.mxu0 %v70
    %341 = vmatprep.subr.mxu0 0.0
    %342 = vmatpush1.msra.mxu0 %v71
    %343 = vmatprep.subr.mxu0 0.0
    %344 = vmatpush1.msra.mxu0 %v72
    %345 = vmatprep.subr.mxu0 0.0
    %346 = vmatpush1.msra.mxu0 %v73
    %347 = vmatprep.subr.mxu0 0.0
    %348 = vmatpush1.msra.mxu0 %v74
    %349 = vmatprep.subr.mxu0 0.0
    %350 = vmatpush1.msra.mxu0 %v75
    %351 = vmatprep.subr.mxu0 0.0
    %352 = vmatpush1.msra.mxu0 %v76
    %353 = vmatprep.subr.mxu0 0.0
    %354 = vmatpush1.msra.mxu0 %v77
    %355 = vmatprep.subr.mxu0 0.0
    %356 = vmatpush1.msra.mxu0 %v78
    %357 = vmatprep.subr.mxu0 0.0
    %358 = vmatpush1.msra.mxu0 0.0
    %359 = vmatprep.subr.mxu0 0.0
    %360 = vmatpush1.msra.mxu0 0.0
    %361 = vmatprep.subr.mxu0 0.0
    %362 = vmatpush1.msra.mxu0 0.0
    %363 = vmatprep.subr.mxu0 0.0
    %364 = vmatpush1.msra.mxu0 0.0
    %365 = vmatprep.subr.mxu0 0.0
    %366 = vmatpush1.msra.mxu0 0.0
    %367 = vmatprep.subr.mxu0 0.0
    %368 = vmatpush1.msra.mxu0 0.0
    %369 = vmatprep.subr.mxu0 0.0
    %370 = vmatpush1.msra.mxu0 0.0
    %371 = vmatprep.subr.mxu0 0.0
    %372 = vmatpush1.msra.mxu0 0.0
    %373 = vmatprep.subr.mxu0 0.0
    %374 = vmatpush1.msra.mxu0 0.0
    %375 = vmatprep.subr.mxu0 0.0
    %376 = vmatpush1.msra.mxu0 0.0
    %377 = vmatprep.subr.mxu0 0.0
    %378 = vmatpush1.msra.mxu0 0.0
    %379 = vmatprep.subr.mxu0 0.0
    %380 = vmatpush1.msra.mxu0 0.0
    %381 = vmatprep.subr.mxu0 0.0
    %382 = vmatpush1.msra.mxu0 0.0
    %383 = vmatprep.subr.mxu0 0.0
    %384 = vmatpush1.msra.mxu0 0.0
    %385 = vmatprep.subr.mxu0 0.0
    %386 = vmatpush1.msra.mxu0 0.0
    %387 = vmatprep.subr.mxu0 0.0
    %388 = vmatpush1.msra.mxu0 0.0
    %389 = vmatprep.mubr.f32.mxu0 0.0
    %390 = vmatmul.mubr.f32.gmra.mrb[0].mxu0 %v320
    %v391 = vpop.f32.mrb[0].mxu0
    %v392 = vadd.f32 %v324, %v391
    %v393 = vpop.f32.mrb[0].mxu0
    %394 = vdwg.mxu0
    %395 = vst [vmem:[#allocation7] sm:$0xff] %v392
    // Predicated region
    $region30: #{tpu_custom_call.1} parent=1 // pred_check
      _
    $region31: #{tpu_custom_call.1} parent=1 // pred_check_branch
      %397 = sbr.rel (0) target = $region33
    $region32: #{tpu_custom_call.1} parent=1 // pred_region
      %s399 = ssub.s32 128, 128
      %400 = vsyncadd [#allocation4], %s399
      %s402 = sshll.u32 [#allocation7], 4
      %s403 = int_to_ptr.vmem [resolvable:$true] %s402
      %405 = dma.vmem_to_hbm [thread:$0]  %s403, 128, %s5, [#allocation4]
    $region33: #{tpu_custom_call.1} parent=1 // pred_fallthru
      _
    // Predicated region
    $region34: #{tpu_custom_call.1} parent=1 // pred_check
      _
    $region35: #{tpu_custom_call.1} parent=1 // pred_check_branch
      %407 = sbr.rel (0) target = $region37
    $region36: #{tpu_custom_call.1} parent=1 // pred_region
      %408 = dma.done [#allocation4], 128
    $region37: #{tpu_custom_call.1} parent=1 // pred_fallthru
      _
    %409 = vsyncpa [#allocation3], 1
    %410 = vsyncpa [#allocation6], 1
    %411 = vsyncpa [#allocation4], 1

</llo_original>
